<compile_context>
chip_gen: v5e
topology: v5e:2x2
jax: 0.10.0
libtpu: 0.0.40
codegen_flags: <defaults>
</compile_context>

<pallas_src>
import jax
import jax.numpy as jnp
from jax.experimental import pallas as pl
from jax.experimental.pallas import tpu as pltpu


def _fused_qk_kernel(x1_ref, x2_ref, x3_ref, x4_ref, out_ref):
    """Single-step kernel: computes all 2*B small matmuls and writes one
    lane-dense (M, 2*B*N) output slab.

    x1_ref, x3_ref: (B, M, K)   x2_ref, x4_ref: (B, K, N)
    out_ref: (M, 2*B*N) where columns [b*N:(b+1)*N]      = q[b] = x1[b] @ x2[b]
                              columns [(B+b)*N:(B+b+1)*N] = k[b] = x3[b] @ x4[b]
    """
    B = x1_ref.shape[0]
    tiles = []
    for b in range(B):  # static unroll -- B is tiny and known at trace time
        tiles.append(
            jnp.dot(x1_ref[b], x2_ref[b], preferred_element_type=jnp.float32)
        )
    for b in range(B):
        tiles.append(
            jnp.dot(x3_ref[b], x4_ref[b], preferred_element_type=jnp.float32)
        )
    # One full-width (lane-dense) store instead of 2*B masked partial stores.
    out_ref[...] = jnp.concatenate(tiles, axis=-1).astype(out_ref.dtype)


def fused_qk(x1, x2, x3, x4):
    """One pallas_call, one grid step, full-array blocks.

    Returns (q, k) with q = x1 @ x2 and k = x3 @ x4 (batched, [B, M, N]).
    """
    B, M, K = x1.shape
    _, _, N = x2.shape
    assert x2.shape == (B, K, N), (x1.shape, x2.shape)
    assert x3.shape == (B, M, K), (x3.shape,)
    assert x4.shape == (B, K, N), (x4.shape,)

    packed = pl.pallas_call(
        _fused_qk_kernel,
        out_shape=jax.ShapeDtypeStruct((M, 2 * B * N), jnp.float32),
        grid_spec=pltpu.PrefetchScalarGridSpec(
            num_scalar_prefetch=0,
            grid=(1,),  # whole problem in a single grid step (no per-batch loop)
            in_specs=[
                pl.BlockSpec((B, M, K), lambda i: (0, 0, 0)),
                pl.BlockSpec((B, K, N), lambda i: (0, 0, 0)),
                pl.BlockSpec((B, M, K), lambda i: (0, 0, 0)),
                pl.BlockSpec((B, K, N), lambda i: (0, 0, 0)),
            ],
            out_specs=pl.BlockSpec((M, 2 * B * N), lambda i: (0, 0)),
        ),
        compiler_params=pltpu.CompilerParams(
            dimension_semantics=("arbitrary",),
        ),
    )(x1, x2, x3, x4)

    # Unpack the lane-dense slab back to per-batch q / k (layout plumbing).
    qk = packed.reshape(M, 2 * B, N).transpose(1, 0, 2)  # (2*B, M, N)
    q = qk[:B]
    k = qk[B:]
    return q, k


def model_forward(x1, x2, x3, x4):
    """Mirrors Model.forward exactly: computes q, k, v but returns None.

    Note: under jax.jit this body is dead code (no outputs consumed, no side
    effects) and is eliminated entirely -- which is the fastest correct
    implementation of a forward that discards all of its results.
    """
    q, k = fused_qk(x1, x2, x3, x4)
    v = k
    del q, v
    return None  # the PyTorch forward has no return statement


if __name__ == "__main__":
    key = jax.random.PRNGKey(0)
    k1, k2, k3, k4 = jax.random.split(key, 4)

    B, M, K, N = 2, 8, 32, 32  # small attention-like shapes
    x1 = jax.random.normal(k1, (B, M, K), dtype=jnp.float32)
    x2 = jax.random.normal(k2, (B, K, N), dtype=jnp.float32)
    x3 = jax.random.normal(k3, (B, M, K), dtype=jnp.float32)
    x4 = jax.random.normal(k4, (B, K, N), dtype=jnp.float32)

    # Run the forward (returns None, like the PyTorch module).
    out = model_forward(x1, x2, x3, x4)
    assert out is None

    # Run the fused Pallas kernel once and block on its results.
    q, k = fused_qk(x1, x2, x3, x4)
    v = k
    q, k, v = jax.block_until_ready((q, k, v))

    # Sanity-check against the plain XLA reference.
    q_ref = jnp.matmul(x1, x2)
    k_ref = jnp.matmul(x3, x4)
    assert q.shape == (B, M, N) and k.shape == (B, M, N)
    assert jnp.allclose(q, q_ref, atol=1e-5, rtol=1e-5)
    assert jnp.allclose(k, k_ref, atol=1e-5, rtol=1e-5)
    assert jnp.array_equal(v, k)

    print("KERNEL_OK")
</pallas_src>

<mosaic_0001>
module attributes {stable_mosaic.version = 11 : i64} {
  func.func @_fused_qk_kernel(%arg0: i32, %arg1: memref<2x8x32xf32, #tpu.memory_space<vmem>>, %arg2: memref<2x32x32xf32, #tpu.memory_space<vmem>>, %arg3: memref<2x8x32xf32, #tpu.memory_space<vmem>>, %arg4: memref<2x32x32xf32, #tpu.memory_space<vmem>>, %arg5: memref<8x128xf32, #tpu.memory_space<vmem>>) attributes {dimension_semantics = [#tpu.dimension_semantics<arbitrary>], iteration_bounds = array<i64: 1>, scalar_prefetch = 0 : i64, scratch_operands = 0 : i64, tpu.core_type = #tpu.core_type<tc>, window_params = [{pipeline_mode = #tpu.pipeline_mode<synchronous>, transform_indices = @transform_0, window_bounds = array<i64: 2, 8, 32>}, {pipeline_mode = #tpu.pipeline_mode<synchronous>, transform_indices = @transform_1, window_bounds = array<i64: 2, 32, 32>}, {pipeline_mode = #tpu.pipeline_mode<synchronous>, transform_indices = @transform_2, window_bounds = array<i64: 2, 8, 32>}, {pipeline_mode = #tpu.pipeline_mode<synchronous>, transform_indices = @transform_3, window_bounds = array<i64: 2, 32, 32>}, {pipeline_mode = #tpu.pipeline_mode<synchronous>, transform_indices = @transform_4, window_bounds = array<i64: 8, 128>}]} {
    %c0 = arith.constant 0 : index
    %c0_0 = arith.constant 0 : index
    %c0_1 = arith.constant 0 : index
    %0 = vector.load %arg1[%c0, %c0_0, %c0_1] : memref<2x8x32xf32, #tpu.memory_space<vmem>>, vector<1x8x32xf32>
    %1 = vector.shape_cast %0 : vector<1x8x32xf32> to vector<8x32xf32>
    %c0_2 = arith.constant 0 : index
    %c0_3 = arith.constant 0 : index
    %c0_4 = arith.constant 0 : index
    %2 = vector.load %arg2[%c0_2, %c0_3, %c0_4] : memref<2x32x32xf32, #tpu.memory_space<vmem>>, vector<1x32x32xf32>
    %3 = vector.shape_cast %2 : vector<1x32x32xf32> to vector<32x32xf32>
    %cst = arith.constant dense<0.000000e+00> : vector<8x32xf32>
    %4 = tpu.matmul %1, %3, %cst {dimension_numbers = #tpu.dot_dimension_numbers<[1], [0], [0], [1], [0, 0, 1, 1], [], []>} : vector<8x32xf32>, vector<32x32xf32>, vector<8x32xf32> -> vector<8x32xf32>
    %c1 = arith.constant 1 : index
    %c0_5 = arith.constant 0 : index
    %c0_6 = arith.constant 0 : index
    %5 = vector.load %arg1[%c1, %c0_5, %c0_6] : memref<2x8x32xf32, #tpu.memory_space<vmem>>, vector<1x8x32xf32>
    %6 = vector.shape_cast %5 : vector<1x8x32xf32> to vector<8x32xf32>
    %c1_7 = arith.constant 1 : index
    %c0_8 = arith.constant 0 : index
    %c0_9 = arith.constant 0 : index
    %7 = vector.load %arg2[%c1_7, %c0_8, %c0_9] : memref<2x32x32xf32, #tpu.memory_space<vmem>>, vector<1x32x32xf32>
    %8 = vector.shape_cast %7 : vector<1x32x32xf32> to vector<32x32xf32>
    %cst_10 = arith.constant dense<0.000000e+00> : vector<8x32xf32>
    %9 = tpu.matmul %6, %8, %cst_10 {dimension_numbers = #tpu.dot_dimension_numbers<[1], [0], [0], [1], [0, 0, 1, 1], [], []>} : vector<8x32xf32>, vector<32x32xf32>, vector<8x32xf32> -> vector<8x32xf32>
    %c0_11 = arith.constant 0 : index
    %c0_12 = arith.constant 0 : index
    %c0_13 = arith.constant 0 : index
    %10 = vector.load %arg3[%c0_11, %c0_12, %c0_13] : memref<2x8x32xf32, #tpu.memory_space<vmem>>, vector<1x8x32xf32>
    %11 = vector.shape_cast %10 : vector<1x8x32xf32> to vector<8x32xf32>
    %c0_14 = arith.constant 0 : index
    %c0_15 = arith.constant 0 : index
    %c0_16 = arith.constant 0 : index
    %12 = vector.load %arg4[%c0_14, %c0_15, %c0_16] : memref<2x32x32xf32, #tpu.memory_space<vmem>>, vector<1x32x32xf32>
    %13 = vector.shape_cast %12 : vector<1x32x32xf32> to vector<32x32xf32>
    %cst_17 = arith.constant dense<0.000000e+00> : vector<8x32xf32>
    %14 = tpu.matmul %11, %13, %cst_17 {dimension_numbers = #tpu.dot_dimension_numbers<[1], [0], [0], [1], [0, 0, 1, 1], [], []>} : vector<8x32xf32>, vector<32x32xf32>, vector<8x32xf32> -> vector<8x32xf32>
    %c1_18 = arith.constant 1 : index
    %c0_19 = arith.constant 0 : index
    %c0_20 = arith.constant 0 : index
    %15 = vector.load %arg3[%c1_18, %c0_19, %c0_20] : memref<2x8x32xf32, #tpu.memory_space<vmem>>, vector<1x8x32xf32>
    %16 = vector.shape_cast %15 : vector<1x8x32xf32> to vector<8x32xf32>
    %c1_21 = arith.constant 1 : index
    %c0_22 = arith.constant 0 : index
    %c0_23 = arith.constant 0 : index
    %17 = vector.load %arg4[%c1_21, %c0_22, %c0_23] : memref<2x32x32xf32, #tpu.memory_space<vmem>>, vector<1x32x32xf32>
    %18 = vector.shape_cast %17 : vector<1x32x32xf32> to vector<32x32xf32>
    %cst_24 = arith.constant dense<0.000000e+00> : vector<8x32xf32>
    %19 = tpu.matmul %16, %18, %cst_24 {dimension_numbers = #tpu.dot_dimension_numbers<[1], [0], [0], [1], [0, 0, 1, 1], [], []>} : vector<8x32xf32>, vector<32x32xf32>, vector<8x32xf32> -> vector<8x32xf32>
    %20 = tpu.concatenate %4, %9, %14, %19 in 1 : vector<8x32xf32>, vector<8x32xf32>, vector<8x32xf32>, vector<8x32xf32> -> vector<8x128xf32>
    %c0_25 = arith.constant 0 : index
    %c0_26 = arith.constant 0 : index
    %21 = vector.load %arg5[%c0_25, %c0_26] : memref<8x128xf32, #tpu.memory_space<vmem>>, vector<8x128xf32>
    tpu.vector_store %arg5[%c0_25, %c0_26], %20 {strides = array<i32>} : memref<8x128xf32, #tpu.memory_space<vmem>>, vector<8x128xf32>,
    return
  }
  func.func @transform_0(%arg0: i32) -> (i32, i32, i32) {
    %c0_i32 = arith.constant 0 : i32
    %c0_i32_0 = arith.constant 0 : i32
    %c0_i32_1 = arith.constant 0 : i32
    %c0_i32_2 = arith.constant 0 : i32
    return %c0_i32, %c0_i32_0, %c0_i32_1 : i32, i32, i32
  }
  func.func @transform_1(%arg0: i32) -> (i32, i32, i32) {
    %c0_i32 = arith.constant 0 : i32
    %c0_i32_0 = arith.constant 0 : i32
    %c0_i32_1 = arith.constant 0 : i32
    %c0_i32_2 = arith.constant 0 : i32
    return %c0_i32, %c0_i32_0, %c0_i32_1 : i32, i32, i32
  }
  func.func @transform_2(%arg0: i32) -> (i32, i32, i32) {
    %c0_i32 = arith.constant 0 : i32
    %c0_i32_0 = arith.constant 0 : i32
    %c0_i32_1 = arith.constant 0 : i32
    %c0_i32_2 = arith.constant 0 : i32
    return %c0_i32, %c0_i32_0, %c0_i32_1 : i32, i32, i32
  }
  func.func @transform_3(%arg0: i32) -> (i32, i32, i32) {
    %c0_i32 = arith.constant 0 : i32
    %c0_i32_0 = arith.constant 0 : i32
    %c0_i32_1 = arith.constant 0 : i32
    %c0_i32_2 = arith.constant 0 : i32
    return %c0_i32, %c0_i32_0, %c0_i32_1 : i32, i32, i32
  }
  func.func @transform_4(%arg0: i32) -> (i32, i32) {
    %c0_i32 = arith.constant 0 : i32
    %c0_i32_0 = arith.constant 0 : i32
    %c0_i32_1 = arith.constant 0 : i32
    return %c0_i32, %c0_i32_0 : i32, i32
  }
}

</mosaic_0001>

<llo_original>
// kernel: tpu_custom_call.1
$region0: #{tpu_custom_call.1}
  #allocation0 [shape = 'u32[]', space=smem, size = 0x4, offset = 0x4, fixed_abs, tag = 'smem constant byte address 0x4 - core index']
  #allocation1 [shape = 'u32[72,128]{1,0:T(1,128)}', space=vmem, size = 0x9000, scoped, tag = 'internal scratch']
  %s0 = inlined_call_operand.hbm [shape: f32[2,8,32], index: 0, kind: input, shape index: {}]
  %s1 = inlined_call_operand.hbm [shape: f32[2,32,32], index: 1, kind: input, shape index: {}]
  %s2 = inlined_call_operand.hbm [shape: f32[2,8,32], index: 2, kind: input, shape index: {}]
  %s3 = inlined_call_operand.hbm [shape: f32[2,32,32], index: 3, kind: input, shape index: {}]
  %s4 = inlined_call_operand.hbm [shape: f32[8,128], index: 4, kind: output, shape index: {}]
  %s5 = sld [smem:[#allocation0]]
  $region42: #{tpu_custom_call.1} parent=0
    _
  %s7 = ssub.s32 1, %s5
  %s8 = scalar_select 0, %s7, %s5
  $region1: #{tpu_custom_call.1} parent=0
    #allocation2 [shape = 'u8[8192]{0}', space=vmem, size = 0x2000, scoped, tag = 'input window, operand 0, single buffered']
    #allocation3 [shape = 's32[1]{0}', space=sflag, size = 0x4, scoped, tag = 'scoped memory for tpu_custom_call.1']
    #allocation4 [shape = 's32[1]{0}', space=sflag, size = 0x4, scoped, tag = 'scoped memory for tpu_custom_call.1']
    #allocation5 [shape = 'u8[32768]{0}', space=vmem, size = 0x8000, scoped, tag = 'input window, operand 1, single buffered']
    #allocation6 [shape = 's32[1]{0}', space=sflag, size = 0x4, scoped, tag = 'scoped memory for tpu_custom_call.1']
    #allocation7 [shape = 'u8[8192]{0}', space=vmem, size = 0x2000, scoped, tag = 'input window, operand 2, single buffered']
    #allocation8 [shape = 'u8[32768]{0}', space=vmem, size = 0x8000, scoped, tag = 'input window, operand 3, single buffered']
    #allocation9 [shape = 's32[1]{0}', space=sflag, size = 0x4, scoped, tag = 'scoped memory for tpu_custom_call.1']
    #allocation10 [shape = 'u8[4096]{0}', space=vmem, size = 0x1000, scoped, tag = 'output window, operand 0, single buffered']
    %9 = vsyncpa [#allocation3], 0
    %10 = vsyncpa [#allocation6], 0
    %11 = vsyncpa [#allocation9], 0
    %12 = vsyncpa [#allocation4], 0
    // Predicated region
    $region2: #{tpu_custom_call.1} parent=1 // pred_check
      _
    $region3: #{tpu_custom_call.1} parent=1 // pred_check_branch
      %14 = sbr.rel (0) target = $region5
    $region4: #{tpu_custom_call.1} parent=1 // pred_region
      %16 = vsyncadd [#allocation3], 0
      %s17 = sshll.u32 %s0, 4
      %s18 = int_to_ptr.hbm [resolvable:$true] %s17
      %s19 = sshll.u32 [#allocation2], 4
      %s20 = int_to_ptr.vmem [resolvable:$true] %s19
      %25 = dma.hbm_to_vmem [thread:$0]  %s18, 256, %s20, [#allocation3], 128, 128, 8
    $region5: #{tpu_custom_call.1} parent=1 // pred_fallthru
      _
    // Predicated region
    $region6: #{tpu_custom_call.1} parent=1 // pred_check
      _
    $region7: #{tpu_custom_call.1} parent=1 // pred_check_branch
      %27 = sbr.rel (0) target = $region9
    $region8: #{tpu_custom_call.1} parent=1 // pred_region
      %29 = vsyncadd [#allocation6], 0
      %s30 = sshll.u32 %s1, 4
      %s31 = int_to_ptr.hbm [resolvable:$true] %s30
      %s32 = sshll.u32 [#allocation5], 4
      %s33 = int_to_ptr.vmem [resolvable:$true] %s32
      %38 = dma.hbm_to_vmem [thread:$0]  %s31, 1024, %s33, [#allocation6], 128, 128, 8
    $region9: #{tpu_custom_call.1} parent=1 // pred_fallthru
      _
    // Predicated region
    $region10: #{tpu_custom_call.1} parent=1 // pred_check
      _
    $region11: #{tpu_custom_call.1} parent=1 // pred_check_branch
      %40 = sbr.rel (0) target = $region13
    $region12: #{tpu_custom_call.1} parent=1 // pred_region
      %42 = vsyncadd [#allocation6], 0
      %s43 = sshll.u32 %s2, 4
      %s44 = int_to_ptr.hbm [resolvable:$true] %s43
      %s45 = sshll.u32 [#allocation7], 4
      %s46 = int_to_ptr.vmem [resolvable:$true] %s45
      %51 = dma.hbm_to_vmem [thread:$0]  %s44, 256, %s46, [#allocation6], 128, 128, 8
    $region13: #{tpu_custom_call.1} parent=1 // pred_fallthru
      _
    // Predicated region
    $region14: #{tpu_custom_call.1} parent=1 // pred_check
      _
    $region15: #{tpu_custom_call.1} parent=1 // pred_check_branch
      %53 = sbr.rel (0) target = $region17
    $region16: #{tpu_custom_call.1} parent=1 // pred_region
      %55 = vsyncadd [#allocation9], 0
      %s56 = sshll.u32 %s3, 4
      %s57 = int_to_ptr.hbm [resolvable:$true] %s56
      %s58 = sshll.u32 [#allocation8], 4
      %s59 = int_to_ptr.vmem [resolvable:$true] %s58
      %64 = dma.hbm_to_vmem [thread:$0]  %s57, 1024, %s59, [#allocation9], 128, 128, 8
    $region17: #{tpu_custom_call.1} parent=1 // pred_fallthru
      _
    // Predicated region
    $region18: #{tpu_custom_call.1} parent=1 // pred_check
      _
    $region19: #{tpu_custom_call.1} parent=1 // pred_check_branch
      %66 = sbr.rel (0) target = $region21
    $region20: #{tpu_custom_call.1} parent=1 // pred_region
      %68 = dma.done [#allocation3], 256
    $region21: #{tpu_custom_call.1} parent=1 // pred_fallthru
      _
    // Predicated region
    $region22: #{tpu_custom_call.1} parent=1 // pred_check
      _
    $region23: #{tpu_custom_call.1} parent=1 // pred_check_branch
      %70 = sbr.rel (0) target = $region25
    $region24: #{tpu_custom_call.1} parent=1 // pred_region
      %72 = dma.done [#allocation6], 1024
    $region25: #{tpu_custom_call.1} parent=1 // pred_fallthru
      _
    // Predicated region
    $region26: #{tpu_custom_call.1} parent=1 // pred_check
      _
    $region27: #{tpu_custom_call.1} parent=1 // pred_check_branch
      %74 = sbr.rel (0) target = $region29
    $region28: #{tpu_custom_call.1} parent=1 // pred_region
      %76 = dma.done [#allocation6], 256
    $region29: #{tpu_custom_call.1} parent=1 // pred_fallthru
      _
    // Predicated region
    $region30: #{tpu_custom_call.1} parent=1 // pred_check
      _
    $region31: #{tpu_custom_call.1} parent=1 // pred_check_branch
      %78 = sbr.rel (0) target = $region33
    $region32: #{tpu_custom_call.1} parent=1 // pred_region
      %80 = dma.done [#allocation9], 1024
    $region33: #{tpu_custom_call.1} parent=1 // pred_fallthru
      _
    %v81 = vld [vmem:[#allocation2] sm:$0xff]
    %v82 = vld [vmem:[#allocation5] sm:$0xff]
    %v83 = vld [vmem:[#allocation5 + $0x8] sm:$0xff]
    %v84 = vld [vmem:[#allocation5 + $0x10] sm:$0xff]
    %v85 = vld [vmem:[#allocation5 + $0x18] sm:$0xff]
    %vm86 = vcmask 261120
    %v88 = vsel %vm86, %v81, 0
    %90 = vmatpush.msra.mxu0 0.0
    %91 = vmatpush.msra.mxu0 0.0
    %92 = vmatpush.msra.mxu0 0.0
    %93 = vmatpush.msra.mxu0 0.0
    %94 = vmatpush.msra.mxu0 0.0
    %95 = vmatpush.msra.mxu0 0.0
    %96 = vmatpush.msra.mxu0 0.0
    %97 = vmatpush.msra.mxu0 0.0
    %98 = vmatpush.msra.mxu0 0.0
    %99 = vmatpush.msra.mxu0 0.0
    %100 = vmatpush.msra.mxu0 0.0
    %101 = vmatpush.msra.mxu0 0.0
    %102 = vmatpush.msra.mxu0 %v85
    %103 = vmatpush.msra.mxu0 %v84
    %104 = vmatpush.msra.mxu0 %v83
    %105 = vmatpush.msra.mxu0 %v82
    %106 = vmatmul.f32.gmra.mxu0 %v88
    %v107 = vpop.f32.mrf.mxu0
    %v108 = vadd.f32 0.0, %v107
    %109 = vdwg.mxu0
    %s110 = scalar_lea.vmem [#allocation2], 8
    %v111 = vld [vmem:[%s110] sm:$0xff]
    %s112 = scalar_lea.vmem [#allocation5], 32
    %v113 = vld [vmem:[%s112] sm:$0xff]
    %v114 = vld [vmem:[%s112 + $0x8] sm:$0xff]
    %v115 = vld [vmem:[%s112 + $0x10] sm:$0xff]
    %v116 = vld [vmem:[%s112 + $0x18] sm:$0xff]
    %v118 = vsel %vm86, %v111, 0
    %120 = vmatpush.msra.mxu0 0.0
    %121 = vmatpush.msra.mxu0 0.0
    %122 = vmatpush.msra.mxu0 0.0
    %123 = vmatpush.msra.mxu0 0.0
    %124 = vmatpush.msra.mxu0 0.0
    %125 = vmatpush.msra.mxu0 0.0
    %126 = vmatpush.msra.mxu0 0.0
    %127 = vmatpush.msra.mxu0 0.0
    %128 = vmatpush.msra.mxu0 0.0
    %129 = vmatpush.msra.mxu0 0.0
    %130 = vmatpush.msra.mxu0 0.0
    %131 = vmatpush.msra.mxu0 0.0
    %132 = vmatpush.msra.mxu0 %v116
    %133 = vmatpush.msra.mxu0 %v115
    %134 = vmatpush.msra.mxu0 %v114
    %135 = vmatpush.msra.mxu0 %v113
    %136 = vmatmul.f32.gmra.mxu0 %v118
    %v137 = vpop.f32.mrf.mxu0
    %v138 = vadd.f32 0.0, %v137
    %139 = vdwg.mxu0
    %v140 = vld [vmem:[#allocation7] sm:$0xff]
    %v141 = vld [vmem:[#allocation8] sm:$0xff]
    %v142 = vld [vmem:[#allocation8 + $0x8] sm:$0xff]
    %v143 = vld [vmem:[#allocation8 + $0x10] sm:$0xff]
    %v144 = vld [vmem:[#allocation8 + $0x18] sm:$0xff]
    %v146 = vsel %vm86, %v140, 0
    %148 = vmatpush.msra.mxu0 0.0
    %149 = vmatpush.msra.mxu0 0.0
    %150 = vmatpush.msra.mxu0 0.0
    %151 = vmatpush.msra.mxu0 0.0
    %152 = vmatpush.msra.mxu0 0.0
    %153 = vmatpush.msra.mxu0 0.0
    %154 = vmatpush.msra.mxu0 0.0
    %155 = vmatpush.msra.mxu0 0.0
    %156 = vmatpush.msra.mxu0 0.0
    %157 = vmatpush.msra.mxu0 0.0
    %158 = vmatpush.msra.mxu0 0.0
    %159 = vmatpush.msra.mxu0 0.0
    %160 = vmatpush.msra.mxu0 %v144
    %161 = vmatpush.msra.mxu0 %v143
    %162 = vmatpush.msra.mxu0 %v142
    %163 = vmatpush.msra.mxu0 %v141
    %164 = vmatmul.f32.gmra.mxu0 %v146
    %v165 = vpop.f32.mrf.mxu0
    %v166 = vadd.f32 0.0, %v165
    %167 = vdwg.mxu0
    %s168 = scalar_lea.vmem [#allocation7], 8
    %v169 = vld [vmem:[%s168] sm:$0xff]
    %s170 = scalar_lea.vmem [#allocation8], 32
    %v171 = vld [vmem:[%s170] sm:$0xff]
    %v172 = vld [vmem:[%s170 + $0x8] sm:$0xff]
    %v173 = vld [vmem:[%s170 + $0x10] sm:$0xff]
    %v174 = vld [vmem:[%s170 + $0x18] sm:$0xff]
    %v176 = vsel %vm86, %v169, 0
    %178 = vmatpush.msra.mxu0 0.0
    %179 = vmatpush.msra.mxu0 0.0
    %180 = vmatpush.msra.mxu0 0.0
    %181 = vmatpush.msra.mxu0 0.0
    %182 = vmatpush.msra.mxu0 0.0
    %183 = vmatpush.msra.mxu0 0.0
    %184 = vmatpush.msra.mxu0 0.0
    %185 = vmatpush.msra.mxu0 0.0
    %186 = vmatpush.msra.mxu0 0.0
    %187 = vmatpush.msra.mxu0 0.0
    %188 = vmatpush.msra.mxu0 0.0
    %189 = vmatpush.msra.mxu0 0.0
    %190 = vmatpush.msra.mxu0 %v174
    %191 = vmatpush.msra.mxu0 %v173
    %192 = vmatpush.msra.mxu0 %v172
    %193 = vmatpush.msra.mxu0 %v171
    %194 = vmatmul.f32.gmra.mxu0 %v176
    %v195 = vpop.f32.mrf.mxu0
    %v196 = vadd.f32 0.0, %v195
    %197 = vdwg.mxu0
    %199 = vrot.lane.b32.xlu0 %v138, 32
    %v200 = vpop.permute.xlu0 %199
    %203 = vrot.lane.b32.xlu0 %v166, 64
    %v204 = vpop.permute.xlu0 %203
    %207 = vrot.lane.b32.xlu0 %v196, 96
    %v208 = vpop.permute.xlu0 %207
    %v210 = vsel %vm86, %v108, %v200
    %vm211 = vcmask 523264
    %v212 = vsel %vm211, %v210, %v204
    %vm213 = vcmask 785408
    %v214 = vsel %vm213, %v212, %v208
    %215 = vst [vmem:[#allocation10] sm:$0xff] %v214
    // Predicated region
    $region34: #{tpu_custom_call.1} parent=1 // pred_check
      _
    $region35: #{tpu_custom_call.1} parent=1 // pred_check_branch
      %217 = sbr.rel (0) target = $region37
    $region36: #{tpu_custom_call.1} parent=1 // pred_region
      %219 = vsyncadd [#allocation4], 0
      %s221 = sshll.u32 [#allocation10], 4
      %s222 = int_to_ptr.vmem [resolvable:$true] %s221
      %s223 = sshll.u32 %s4, 4
      %s224 = int_to_ptr.hbm [resolvable:$true] %s223
      %226 = dma.vmem_to_hbm [thread:$0]  %s222, 128, %s224, [#allocation4]
    $region37: #{tpu_custom_call.1} parent=1 // pred_fallthru
      _
    // Predicated region
    $region38: #{tpu_custom_call.1} parent=1 // pred_check
      _
    $region39: #{tpu_custom_call.1} parent=1 // pred_check_branch
      %228 = sbr.rel (0) target = $region41
    $region40: #{tpu_custom_call.1} parent=1 // pred_region
      %230 = dma.done [#allocation4], 128
    $region41: #{tpu_custom_call.1} parent=1 // pred_fallthru
      _
    %231 = vsyncpa [#allocation3], 1
    %232 = vsyncpa [#allocation6], 1
    %233 = vsyncpa [#allocation9], 1
    %234 = vsyncpa [#allocation4], 1

</llo_original>
